<compile_context>
chip_gen: v5e
topology: v5e:2x2
jax: 0.10.0
libtpu: 0.0.40
codegen_flags: <defaults>
</compile_context>

<pallas_src>
import math
from functools import partial

import jax
import jax.numpy as jnp
from jax.experimental import pallas as pl
from jax.experimental.pallas import tpu as pltpu

DIM_IN = 32   # dim_in
DIM_K = 32    # dim_q == dim_k (score = q @ k^T requires dim_q == dim_k)


# --------------------------- Pallas kernel -----------------------------------
def attention_head_kernel(q_ref, k_ref, v_ref,
                          wq_ref, bq_ref, wk_ref, bk_ref, wv_ref, bv_ref,
                          o_ref, *, batch, seq):
    """Fused AttentionHead forward.

    q_ref/k_ref/v_ref : (B*S, DIM_IN)  flattened query / key / value activations
    w*_ref            : (DIM_IN, dk)   projection weights
    b*_ref            : (1, dk)        projection biases
    o_ref             : (B*S, dk)
    """
    dk = o_ref.shape[-1]
    inv_scale = 1.0 / math.sqrt(dk)   # static, folded at trace time

    # Projections: one wide MXU push each over the flattened (B*S, D) operand.
    q = jnp.dot(q_ref[...], wq_ref[...],
                preferred_element_type=jnp.float32) + bq_ref[...]
    k = jnp.dot(k_ref[...], wk_ref[...],
                preferred_element_type=jnp.float32) + bk_ref[...]
    v = jnp.dot(v_ref[...], wv_ref[...],
                preferred_element_type=jnp.float32) + bv_ref[...]

    # Split the leading dim only (minor (8,128) tile untouched -> no relayout).
    q3 = q.reshape(batch, seq, dk)
    k3 = k.reshape(batch, seq, dk)
    v3 = v.reshape(batch, seq, dk)

    # TODO(synk): the reference's `score.Tensor.masked_fill_(padding_mask, ...)`
    # is dead/broken code and AttentionHead.forward never passes a mask, so
    # this is unmasked attention.
    score = jnp.einsum('bqd,bkd->bqk', q3, k3,
                       preferred_element_type=jnp.float32)
    score = score * inv_scale
    score = score - jnp.max(score, axis=-1, keepdims=True)
    p = jnp.exp(score)
    p = p * pl.reciprocal(jnp.sum(p, axis=-1, keepdims=True), approx=False)

    out = jnp.einsum('bqk,bkd->bqd', p, v3,
                     preferred_element_type=jnp.float32)
    o_ref[...] = out.reshape(batch * seq, dk).astype(o_ref.dtype)


# --------------------------- wrapper ------------------------------------------
@jax.jit
def attention_head(query, key, value, params):
    """AttentionHead.forward(query, key, value); each input is (B, S, DIM_IN)."""
    wq, bq, wk, bk, wv, bv = params
    B, S, D = query.shape
    dk = wq.shape[-1]

    # Flatten batch into the matmul M dim wrapper-side; biases as (1, dk) rows.
    q2 = query.reshape(B * S, D)
    k2 = key.reshape(B * S, D)
    v2 = value.reshape(B * S, D)
    bq2 = bq.reshape(1, dk)
    bk2 = bk.reshape(1, dk)
    bv2 = bv.reshape(1, dk)

    vmem = pl.BlockSpec(memory_space=pltpu.MemorySpace.VMEM)

    out2 = pl.pallas_call(
        partial(attention_head_kernel, batch=B, seq=S),
        out_shape=jax.ShapeDtypeStruct((B * S, dk), query.dtype),
        in_specs=[vmem] * 9,
        out_specs=vmem,
        compiler_params=pltpu.CompilerParams(vmem_limit_bytes=32 * 1024 * 1024),
    )(q2, k2, v2, wq, bq2, wk, bk2, wv, bv2)
    return out2.reshape(B, S, dk)


# --------------------------- pure-JAX reference --------------------------------
def ref_attention_head(query, key, value, params):
    wq, bq, wk, bk, wv, bv = params
    hp = jax.lax.Precision.HIGHEST
    q = jnp.einsum('bsd,de->bse', query, wq, precision=hp) + bq
    k = jnp.einsum('bsd,de->bse', key, wk, precision=hp) + bk
    v = jnp.einsum('bsd,de->bse', value, wv, precision=hp) + bv
    score = jnp.einsum('bqe,bke->bqk', q, k, precision=hp) / math.sqrt(q.shape[-1])
    p = jax.nn.softmax(score, axis=-1)
    return jnp.einsum('bqk,bke->bqe', p, v, precision=hp)


if __name__ == "__main__":
    root = jax.random.PRNGKey(0)
    kq, kk, kv, kp = jax.random.split(root, 4)

    B, S = 2, 8
    query = jax.random.normal(kq, (B, S, DIM_IN), jnp.float32)
    key_in = jax.random.normal(kk, (B, S, DIM_IN), jnp.float32)
    value = jax.random.normal(kv, (B, S, DIM_IN), jnp.float32)

    pks = jax.random.split(kp, 6)
    s = 0.1
    wq = jax.random.normal(pks[0], (DIM_IN, DIM_K), jnp.float32) * s
    bq = jax.random.normal(pks[1], (DIM_K,), jnp.float32) * s
    wk = jax.random.normal(pks[2], (DIM_IN, DIM_K), jnp.float32) * s
    bk = jax.random.normal(pks[3], (DIM_K,), jnp.float32) * s
    wv = jax.random.normal(pks[4], (DIM_IN, DIM_K), jnp.float32) * s
    bv = jax.random.normal(pks[5], (DIM_K,), jnp.float32) * s
    params = (wq, bq, wk, bk, wv, bv)

    out = attention_head(query, key_in, value, params)
    out = jax.block_until_ready(out)

    ref = ref_attention_head(query, key_in, value, params)
    assert out.shape == (B, S, DIM_K)
    assert jnp.allclose(out, ref, rtol=2e-3, atol=2e-3), "mismatch vs JAX reference"

    print("KERNEL_OK")
</pallas_src>

<mosaic_0001>
module attributes {stable_mosaic.version = 11 : i64} {
  func.func @attention_head_kernel(%arg0: memref<16x32xf32, #tpu.memory_space<vmem>>, %arg1: memref<16x32xf32, #tpu.memory_space<vmem>>, %arg2: memref<16x32xf32, #tpu.memory_space<vmem>>, %arg3: memref<32x32xf32, #tpu.memory_space<vmem>>, %arg4: memref<1x32xf32, #tpu.memory_space<vmem>>, %arg5: memref<32x32xf32, #tpu.memory_space<vmem>>, %arg6: memref<1x32xf32, #tpu.memory_space<vmem>>, %arg7: memref<32x32xf32, #tpu.memory_space<vmem>>, %arg8: memref<1x32xf32, #tpu.memory_space<vmem>>, %arg9: memref<16x32xf32, #tpu.memory_space<vmem>>) attributes {dimension_semantics = [], scalar_prefetch = 0 : i64, scratch_operands = 0 : i64, tpu.core_type = #tpu.core_type<tc>} {
    %c0 = arith.constant 0 : index
    %c0_0 = arith.constant 0 : index
    %0 = vector.load %arg0[%c0, %c0_0] : memref<16x32xf32, #tpu.memory_space<vmem>>, vector<16x32xf32>
    %c0_1 = arith.constant 0 : index
    %c0_2 = arith.constant 0 : index
    %1 = vector.load %arg3[%c0_1, %c0_2] : memref<32x32xf32, #tpu.memory_space<vmem>>, vector<32x32xf32>
    %cst = arith.constant dense<0.000000e+00> : vector<16x32xf32>
    %2 = tpu.matmul %0, %1, %cst {dimension_numbers = #tpu.dot_dimension_numbers<[1], [0], [0], [1], [0, 0, 1, 1], [], []>} : vector<16x32xf32>, vector<32x32xf32>, vector<16x32xf32> -> vector<16x32xf32>
    %c0_3 = arith.constant 0 : index
    %c0_4 = arith.constant 0 : index
    %3 = vector.load %arg4[%c0_3, %c0_4] : memref<1x32xf32, #tpu.memory_space<vmem>>, vector<1x32xf32>
    %4 = vector.broadcast %3 : vector<1x32xf32> to vector<16x32xf32>
    %5 = arith.addf %2, %4 : vector<16x32xf32>
    %c0_5 = arith.constant 0 : index
    %c0_6 = arith.constant 0 : index
    %6 = vector.load %arg1[%c0_5, %c0_6] : memref<16x32xf32, #tpu.memory_space<vmem>>, vector<16x32xf32>
    %c0_7 = arith.constant 0 : index
    %c0_8 = arith.constant 0 : index
    %7 = vector.load %arg5[%c0_7, %c0_8] : memref<32x32xf32, #tpu.memory_space<vmem>>, vector<32x32xf32>
    %cst_9 = arith.constant dense<0.000000e+00> : vector<16x32xf32>
    %8 = tpu.matmul %6, %7, %cst_9 {dimension_numbers = #tpu.dot_dimension_numbers<[1], [0], [0], [1], [0, 0, 1, 1], [], []>} : vector<16x32xf32>, vector<32x32xf32>, vector<16x32xf32> -> vector<16x32xf32>
    %c0_10 = arith.constant 0 : index
    %c0_11 = arith.constant 0 : index
    %9 = vector.load %arg6[%c0_10, %c0_11] : memref<1x32xf32, #tpu.memory_space<vmem>>, vector<1x32xf32>
    %10 = vector.broadcast %9 : vector<1x32xf32> to vector<16x32xf32>
    %11 = arith.addf %8, %10 : vector<16x32xf32>
    %c0_12 = arith.constant 0 : index
    %c0_13 = arith.constant 0 : index
    %12 = vector.load %arg2[%c0_12, %c0_13] : memref<16x32xf32, #tpu.memory_space<vmem>>, vector<16x32xf32>
    %c0_14 = arith.constant 0 : index
    %c0_15 = arith.constant 0 : index
    %13 = vector.load %arg7[%c0_14, %c0_15] : memref<32x32xf32, #tpu.memory_space<vmem>>, vector<32x32xf32>
    %cst_16 = arith.constant dense<0.000000e+00> : vector<16x32xf32>
    %14 = tpu.matmul %12, %13, %cst_16 {dimension_numbers = #tpu.dot_dimension_numbers<[1], [0], [0], [1], [0, 0, 1, 1], [], []>} : vector<16x32xf32>, vector<32x32xf32>, vector<16x32xf32> -> vector<16x32xf32>
    %c0_17 = arith.constant 0 : index
    %c0_18 = arith.constant 0 : index
    %15 = vector.load %arg8[%c0_17, %c0_18] : memref<1x32xf32, #tpu.memory_space<vmem>>, vector<1x32xf32>
    %16 = vector.broadcast %15 : vector<1x32xf32> to vector<16x32xf32>
    %17 = arith.addf %14, %16 : vector<16x32xf32>
    %18 = vector.shape_cast %5 : vector<16x32xf32> to vector<2x8x32xf32>
    %19 = vector.shape_cast %11 : vector<16x32xf32> to vector<2x8x32xf32>
    %20 = vector.shape_cast %17 : vector<16x32xf32> to vector<2x8x32xf32>
    "tpu.trace_start"() <{level = 10 : i32, message = "bqd,bkd->bqk"}> : () -> ()
    %cst_19 = arith.constant dense<0.000000e+00> : vector<2x8x8xf32>
    %21 = tpu.matmul %18, %19, %cst_19 {dimension_numbers = #tpu.dot_dimension_numbers<[2], [2], [1], [1], [0, 0, 0, 1, 1, 1], [0], [0]>} : vector<2x8x32xf32>, vector<2x8x32xf32>, vector<2x8x8xf32> -> vector<2x8x8xf32>
    "tpu.trace_stop"() : () -> ()
    %cst_20 = arith.constant 0.176776692 : f32
    %22 = vector.broadcast %cst_20 : f32 to vector<2x8x8xf32>
    %23 = arith.mulf %21, %22 : vector<2x8x8xf32>
    %cst_21 = arith.constant dense<0xFF800000> : vector<2x8xf32>
    %24 = vector.multi_reduction <maximumf>, %23, %cst_21 [2] : vector<2x8x8xf32> to vector<2x8xf32>
    %25 = vector.shape_cast %24 : vector<2x8xf32> to vector<2x8x1xf32>
    %26 = vector.broadcast %25 : vector<2x8x1xf32> to vector<2x8x8xf32>
    %27 = arith.subf %23, %26 : vector<2x8x8xf32>
    %28 = math.exp %27 : vector<2x8x8xf32>
    %cst_22 = arith.constant dense<0.000000e+00> : vector<2x8xf32>
    %29 = vector.multi_reduction <add>, %28, %cst_22 [2] : vector<2x8x8xf32> to vector<2x8xf32>
    %30 = vector.shape_cast %29 : vector<2x8xf32> to vector<2x8x1xf32>
    %31 = tpu.reciprocal %30 : vector<2x8x1xf32> -> vector<2x8x1xf32>
    %32 = vector.broadcast %31 : vector<2x8x1xf32> to vector<2x8x8xf32>
    %33 = arith.mulf %28, %32 : vector<2x8x8xf32>
    "tpu.trace_start"() <{level = 10 : i32, message = "bqk,bkd->bqd"}> : () -> ()
    %cst_23 = arith.constant dense<0.000000e+00> : vector<2x8x32xf32>
    %34 = tpu.matmul %33, %20, %cst_23 {dimension_numbers = #tpu.dot_dimension_numbers<[2], [1], [1], [2], [0, 0, 0, 1, 1, 2], [0], [0]>} : vector<2x8x8xf32>, vector<2x8x32xf32>, vector<2x8x32xf32> -> vector<2x8x32xf32>
    "tpu.trace_stop"() : () -> ()
    %35 = vector.shape_cast %34 : vector<2x8x32xf32> to vector<16x32xf32>
    %c0_24 = arith.constant 0 : index
    %c0_25 = arith.constant 0 : index
    %36 = vector.load %arg9[%c0_24, %c0_25] : memref<16x32xf32, #tpu.memory_space<vmem>>, vector<16x32xf32>
    tpu.vector_store %arg9[%c0_24, %c0_25], %35 {strides = array<i32>} : memref<16x32xf32, #tpu.memory_space<vmem>>, vector<16x32xf32>,
    return
  }
}

</mosaic_0001>

<llo_original>
// kernel: attention_head.1
$region0: #{attention_head.1}
  #allocation0 [shape = 'u32[]', space=smem, size = 0x4, offset = 0x4, fixed_abs, tag = 'smem constant byte address 0x4 - core index']
  #allocation1 [shape = 'u32[72,128]{1,0:T(1,128)}', space=vmem, size = 0x9000, scoped, tag = 'internal scratch']
  %s0 = inlined_call_operand.hbm [shape: f32[16,32], index: 0, kind: input, shape index: {}]
  %s1 = inlined_call_operand.hbm [shape: f32[16,32], index: 1, kind: input, shape index: {}]
  %s2 = inlined_call_operand.hbm [shape: f32[16,32], index: 2, kind: input, shape index: {}]
  %s3 = inlined_call_operand.hbm [shape: f32[32,32], index: 3, kind: input, shape index: {}]
  %s4 = inlined_call_operand.vmem [shape: f32[1,32], index: 4, kind: input, shape index: {}]
  %s5 = inlined_call_operand.hbm [shape: f32[32,32], index: 5, kind: input, shape index: {}]
  %s6 = inlined_call_operand.vmem [shape: f32[1,32], index: 6, kind: input, shape index: {}]
  %s7 = inlined_call_operand.hbm [shape: f32[32,32], index: 7, kind: input, shape index: {}]
  %s8 = inlined_call_operand.vmem [shape: f32[1,32], index: 8, kind: input, shape index: {}]
  %s9 = inlined_call_operand.hbm [shape: f32[16,32], index: 9, kind: output, shape index: {}]
  %s10 = sld [smem:[#allocation0]]
  $region70: #{attention_head.1} parent=0
    _
  %s12 = ssub.s32 1, %s10
  %s13 = scalar_select 0, %s12, %s10
  $region1: #{attention_head.1} parent=0
    #allocation2 [shape = 'u8[8192]{0}', space=vmem, size = 0x2000, scoped, tag = 'input window, operand 0, single buffered']
    #allocation3 [shape = 's32[1]{0}', space=sflag, size = 0x4, scoped, tag = 'scoped memory for attention_head.1']
    #allocation4 [shape = 's32[1]{0}', space=sflag, size = 0x4, scoped, tag = 'scoped memory for attention_head.1']
    #allocation5 [shape = 'u8[8192]{0}', space=vmem, size = 0x2000, scoped, tag = 'input window, operand 1, single buffered']
    #allocation6 [shape = 's32[1]{0}', space=sflag, size = 0x4, scoped, tag = 'scoped memory for attention_head.1']
    #allocation7 [shape = 'u8[8192]{0}', space=vmem, size = 0x2000, scoped, tag = 'input window, operand 2, single buffered']
    #allocation8 [shape = 'u8[16384]{0}', space=vmem, size = 0x4000, scoped, tag = 'input window, operand 3, single buffered']
    #allocation9 [shape = 's32[1]{0}', space=sflag, size = 0x4, scoped, tag = 'scoped memory for attention_head.1']
    #allocation10 [shape = 'u8[16384]{0}', space=vmem, size = 0x4000, scoped, tag = 'input window, operand 5, single buffered']
    #allocation11 [shape = 'u8[16384]{0}', space=vmem, size = 0x4000, scoped, tag = 'input window, operand 7, single buffered']
    #allocation12 [shape = 's32[1]{0}', space=sflag, size = 0x4, scoped, tag = 'scoped memory for attention_head.1']
    #allocation13 [shape = 'u8[8192]{0}', space=vmem, size = 0x2000, scoped, tag = 'output window, operand 0, single buffered']
    %14 = vsyncpa [#allocation3], 0
    %15 = vsyncpa [#allocation6], 0
    %16 = vsyncpa [#allocation9], 0
    %17 = vsyncpa [#allocation12], 0
    %18 = vsyncpa [#allocation4], 0
    // Predicated region
    $region2: #{attention_head.1} parent=1 // pred_check
      _
    $region3: #{attention_head.1} parent=1 // pred_check_branch
      %20 = sbr.rel (0) target = $region5
    $region4: #{attention_head.1} parent=1 // pred_region
      %22 = vsyncadd [#allocation3], 0
      %s23 = sshll.u32 %s0, 4
      %s24 = int_to_ptr.hbm [resolvable:$true] %s23
      %s25 = sshll.u32 [#allocation2], 4
      %s26 = int_to_ptr.vmem [resolvable:$true] %s25
      %31 = dma.hbm_to_vmem [thread:$0]  %s24, 256, %s26, [#allocation3], 128, 128, 8
    $region5: #{attention_head.1} parent=1 // pred_fallthru
      _
    // Predicated region
    $region6: #{attention_head.1} parent=1 // pred_check
      _
    $region7: #{attention_head.1} parent=1 // pred_check_branch
      %33 = sbr.rel (0) target = $region9
    $region8: #{attention_head.1} parent=1 // pred_region
      %35 = vsyncadd [#allocation6], 0
      %s36 = sshll.u32 %s1, 4
      %s37 = int_to_ptr.hbm [resolvable:$true] %s36
      %s38 = sshll.u32 [#allocation5], 4
      %s39 = int_to_ptr.vmem [resolvable:$true] %s38
      %44 = dma.hbm_to_vmem [thread:$0]  %s37, 256, %s39, [#allocation6], 128, 128, 8
    $region9: #{attention_head.1} parent=1 // pred_fallthru
      _
    // Predicated region
    $region10: #{attention_head.1} parent=1 // pred_check
      _
    $region11: #{attention_head.1} parent=1 // pred_check_branch
      %46 = sbr.rel (0) target = $region13
    $region12: #{attention_head.1} parent=1 // pred_region
      %48 = vsyncadd [#allocation6], 0
      %s49 = sshll.u32 %s2, 4
      %s50 = int_to_ptr.hbm [resolvable:$true] %s49
      %s51 = sshll.u32 [#allocation7], 4
      %s52 = int_to_ptr.vmem [resolvable:$true] %s51
      %57 = dma.hbm_to_vmem [thread:$0]  %s50, 256, %s52, [#allocation6], 128, 128, 8
    $region13: #{attention_head.1} parent=1 // pred_fallthru
      _
    // Predicated region
    $region14: #{attention_head.1} parent=1 // pred_check
      _
    $region15: #{attention_head.1} parent=1 // pred_check_branch
      %59 = sbr.rel (0) target = $region17
    $region16: #{attention_head.1} parent=1 // pred_region
      %61 = vsyncadd [#allocation9], 0
      %s62 = sshll.u32 %s3, 4
      %s63 = int_to_ptr.hbm [resolvable:$true] %s62
      %s64 = sshll.u32 [#allocation8], 4
      %s65 = int_to_ptr.vmem [resolvable:$true] %s64
      %70 = dma.hbm_to_vmem [thread:$0]  %s63, 512, %s65, [#allocation9], 128, 128, 8
    $region17: #{attention_head.1} parent=1 // pred_fallthru
      _
    // Predicated region
    $region18: #{attention_head.1} parent=1 // pred_check
      _
    $region19: #{attention_head.1} parent=1 // pred_check_branch
      %72 = sbr.rel (0) target = $region21
    $region20: #{attention_head.1} parent=1 // pred_region
      _
    $region21: #{attention_head.1} parent=1 // pred_fallthru
      _
    // Predicated region
    $region22: #{attention_head.1} parent=1 // pred_check
      _
    $region23: #{attention_head.1} parent=1 // pred_check_branch
      %74 = sbr.rel (0) target = $region25
    $region24: #{attention_head.1} parent=1 // pred_region
      %76 = vsyncadd [#allocation9], 0
      %s77 = sshll.u32 %s5, 4
      %s78 = int_to_ptr.hbm [resolvable:$true] %s77
      %s79 = sshll.u32 [#allocation10], 4
      %s80 = int_to_ptr.vmem [resolvable:$true] %s79
      %85 = dma.hbm_to_vmem [thread:$0]  %s78, 512, %s80, [#allocation9], 128, 128, 8
    $region25: #{attention_head.1} parent=1 // pred_fallthru
      _
    // Predicated region
    $region26: #{attention_head.1} parent=1 // pred_check
      _
    $region27: #{attention_head.1} parent=1 // pred_check_branch
      %87 = sbr.rel (0) target = $region29
    $region28: #{attention_head.1} parent=1 // pred_region
      _
    $region29: #{attention_head.1} parent=1 // pred_fallthru
      _
    // Predicated region
    $region30: #{attention_head.1} parent=1 // pred_check
      _
    $region31: #{attention_head.1} parent=1 // pred_check_branch
      %89 = sbr.rel (0) target = $region33
    $region32: #{attention_head.1} parent=1 // pred_region
      %91 = vsyncadd [#allocation12], 0
      %s92 = sshll.u32 %s7, 4
      %s93 = int_to_ptr.hbm [resolvable:$true] %s92
      %s94 = sshll.u32 [#allocation11], 4
      %s95 = int_to_ptr.vmem [resolvable:$true] %s94
      %100 = dma.hbm_to_vmem [thread:$0]  %s93, 512, %s95, [#allocation12], 128, 128, 8
    $region33: #{attention_head.1} parent=1 // pred_fallthru
      _
    // Predicated region
    $region34: #{attention_head.1} parent=1 // pred_check
      _
    $region35: #{attention_head.1} parent=1 // pred_check_branch
      %102 = sbr.rel (0) target = $region37
    $region36: #{attention_head.1} parent=1 // pred_region
      _
    $region37: #{attention_head.1} parent=1 // pred_fallthru
      _
    // Predicated region
    $region38: #{attention_head.1} parent=1 // pred_check
      _
    $region39: #{attention_head.1} parent=1 // pred_check_branch
      %104 = sbr.rel (0) target = $region41
    $region40: #{attention_head.1} parent=1 // pred_region
      %106 = dma.done [#allocation3], 256
    $region41: #{attention_head.1} parent=1 // pred_fallthru
      _
    // Predicated region
    $region42: #{attention_head.1} parent=1 // pred_check
      _
    $region43: #{attention_head.1} parent=1 // pred_check_branch
      %108 = sbr.rel (0) target = $region45
    $region44: #{attention_head.1} parent=1 // pred_region
      %110 = dma.done [#allocation6], 256
    $region45: #{attention_head.1} parent=1 // pred_fallthru
      _
    // Predicated region
    $region46: #{attention_head.1} parent=1 // pred_check
      _
    $region47: #{attention_head.1} parent=1 // pred_check_branch
      %112 = sbr.rel (0) target = $region49
    $region48: #{attention_head.1} parent=1 // pred_region
      %114 = dma.done [#allocation6], 256
    $region49: #{attention_head.1} parent=1 // pred_fallthru
      _
    // Predicated region
    $region50: #{attention_head.1} parent=1 // pred_check
      _
    $region51: #{attention_head.1} parent=1 // pred_check_branch
      %116 = sbr.rel (0) target = $region53
    $region52: #{attention_head.1} parent=1 // pred_region
      %118 = dma.done [#allocation9], 512
    $region53: #{attention_head.1} parent=1 // pred_fallthru
      _
    // Predicated region
    $region54: #{attention_head.1} parent=1 // pred_check
      _
    $region55: #{attention_head.1} parent=1 // pred_check_branch
      %120 = sbr.rel (0) target = $region57
    $region56: #{attention_head.1} parent=1 // pred_region
      %122 = dma.done [#allocation9], 512
    $region57: #{attention_head.1} parent=1 // pred_fallthru
      _
    // Predicated region
    $region58: #{attention_head.1} parent=1 // pred_check
      _
    $region59: #{attention_head.1} parent=1 // pred_check_branch
      %124 = sbr.rel (0) target = $region61
    $region60: #{attention_head.1} parent=1 // pred_region
      %126 = dma.done [#allocation12], 512
    $region61: #{attention_head.1} parent=1 // pred_fallthru
      _
    %v127 = vld [vmem:[#allocation2] sm:$0xff]
    %v128 = vld [vmem:[#allocation2 + $0x8] sm:$0xff]
    %v129 = vld [vmem:[#allocation8] sm:$0xff]
    %v130 = vld [vmem:[#allocation8 + $0x8] sm:$0xff]
    %v131 = vld [vmem:[#allocation8 + $0x10] sm:$0xff]
    %v132 = vld [vmem:[#allocation8 + $0x18] sm:$0xff]
    %v133 = vld [vmem:[%s4] sm:$0x1]
    %v135 = vperm.slane %v133, 0
    %vm137 = vcmask 261120
    %v139 = vsel %vm137, %v127, 0
    %v142 = vsel %vm137, %v128, 0
    %144 = vmatpush.msra.mxu0 0.0
    %145 = vmatpush.msra.mxu0 0.0
    %146 = vmatpush.msra.mxu0 0.0
    %147 = vmatpush.msra.mxu0 0.0
    %148 = vmatpush.msra.mxu0 0.0
    %149 = vmatpush.msra.mxu0 0.0
    %150 = vmatpush.msra.mxu0 0.0
    %151 = vmatpush.msra.mxu0 0.0
    %152 = vmatpush.msra.mxu0 0.0
    %153 = vmatpush.msra.mxu0 0.0
    %154 = vmatpush.msra.mxu0 0.0
    %155 = vmatpush.msra.mxu0 0.0
    %156 = vmatpush.msra.mxu0 %v132
    %157 = vmatpush.msra.mxu0 %v131
    %158 = vmatpush.msra.mxu0 %v130
    %159 = vmatpush.msra.mxu0 %v129
    %160 = vmatmul.f32.gmra.mxu0 %v139
    %v161 = vpop.f32.mrf.mxu0
    %v162 = vadd.f32 %v135, %v161
    %163 = vmatmul.f32.gmra.mxu0 %v142
    %v164 = vpop.f32.mrf.mxu0
    %v165 = vadd.f32 %v135, %v164
    %166 = vdwg.mxu0
    %v167 = vld [vmem:[#allocation5] sm:$0xff]
    %v168 = vld [vmem:[#allocation5 + $0x8] sm:$0xff]
    %v169 = vld [vmem:[#allocation10] sm:$0xff]
    %v170 = vld [vmem:[#allocation10 + $0x8] sm:$0xff]
    %v171 = vld [vmem:[#allocation10 + $0x10] sm:$0xff]
    %v172 = vld [vmem:[#allocation10 + $0x18] sm:$0xff]
    %v173 = vld [vmem:[%s6] sm:$0x1]
    %v175 = vperm.slane %v173, 0
    %v178 = vsel %vm137, %v167, 0
    %v181 = vsel %vm137, %v168, 0
    %183 = vmatpush.msra.mxu0 0.0
    %184 = vmatpush.msra.mxu0 0.0
    %185 = vmatpush.msra.mxu0 0.0
    %186 = vmatpush.msra.mxu0 0.0
    %187 = vmatpush.msra.mxu0 0.0
    %188 = vmatpush.msra.mxu0 0.0
    %189 = vmatpush.msra.mxu0 0.0
    %190 = vmatpush.msra.mxu0 0.0
    %191 = vmatpush.msra.mxu0 0.0
    %192 = vmatpush.msra.mxu0 0.0
    %193 = vmatpush.msra.mxu0 0.0
    %194 = vmatpush.msra.mxu0 0.0
    %195 = vmatpush.msra.mxu0 %v172
    %196 = vmatpush.msra.mxu0 %v171
    %197 = vmatpush.msra.mxu0 %v170
    %198 = vmatpush.msra.mxu0 %v169
    %199 = vmatmul.f32.gmra.mxu0 %v178
    %v200 = vpop.f32.mrf.mxu0
    %v201 = vadd.f32 %v175, %v200
    %202 = vmatmul.f32.gmra.mxu0 %v181
    %v203 = vpop.f32.mrf.mxu0
    %v204 = vadd.f32 %v175, %v203
    %205 = vdwg.mxu0
    %v206 = vld [vmem:[#allocation7] sm:$0xff]
    %v207 = vld [vmem:[#allocation7 + $0x8] sm:$0xff]
    %v208 = vld [vmem:[#allocation11] sm:$0xff]
    %v209 = vld [vmem:[#allocation11 + $0x8] sm:$0xff]
    %v210 = vld [vmem:[#allocation11 + $0x10] sm:$0xff]
    %v211 = vld [vmem:[#allocation11 + $0x18] sm:$0xff]
    %v212 = vld [vmem:[%s8] sm:$0x1]
    %v214 = vperm.slane %v212, 0
    %v217 = vsel %vm137, %v206, 0
    %v220 = vsel %vm137, %v207, 0
    %222 = vmatpush.msra.mxu0 0.0
    %223 = vmatpush.msra.mxu0 0.0
    %224 = vmatpush.msra.mxu0 0.0
    %225 = vmatpush.msra.mxu0 0.0
    %226 = vmatpush.msra.mxu0 0.0
    %227 = vmatpush.msra.mxu0 0.0
    %228 = vmatpush.msra.mxu0 0.0
    %229 = vmatpush.msra.mxu0 0.0
    %230 = vmatpush.msra.mxu0 0.0
    %231 = vmatpush.msra.mxu0 0.0
    %232 = vmatpush.msra.mxu0 0.0
    %233 = vmatpush.msra.mxu0 0.0
    %234 = vmatpush.msra.mxu0 %v211
    %235 = vmatpush.msra.mxu0 %v210
    %236 = vmatpush.msra.mxu0 %v209
    %237 = vmatpush.msra.mxu0 %v208
    %238 = vmatmul.f32.gmra.mxu0 %v217
    %v239 = vpop.f32.mrf.mxu0
    %v240 = vadd.f32 %v214, %v239
    %241 = vmatmul.f32.gmra.mxu0 %v220
    %v242 = vpop.f32.mrf.mxu0
    %v243 = vadd.f32 %v214, %v242
    %244 = vdwg.mxu0
    %v246 = vsel %vm137, %v162, 0
    %v249 = vsel %vm137, %v201, 0
    %251 = vmatpush.xpose.msra.mxu0 0.0
    %252 = vmatpush.xpose.msra.mxu0 0.0
    %253 = vmatpush.xpose.msra.mxu0 0.0
    %254 = vmatpush.xpose.msra.mxu0 0.0
    %255 = vmatpush.xpose.msra.mxu0 0.0
    %256 = vmatpush.xpose.msra.mxu0 0.0
    %257 = vmatpush.xpose.msra.mxu0 0.0
    %258 = vmatpush.xpose.msra.mxu0 0.0
    %259 = vmatpush.xpose.msra.mxu0 0.0
    %260 = vmatpush.xpose.msra.mxu0 0.0
    %261 = vmatpush.xpose.msra.mxu0 0.0
    %262 = vmatpush.xpose.msra.mxu0 0.0
    %263 = vmatpush.xpose.msra.mxu0 0.0
    %264 = vmatpush.xpose.msra.mxu0 0.0
    %265 = vmatpush.xpose.msra.mxu0 0.0
    %266 = vmatpush.xpose.msra.mxu0 %v249
    %267 = vmatmul.f32.gmra.mxu0 %v246
    %v268 = vpop.f32.mrf.mxu0
    %v269 = vadd.f32 0.0, %v268
    %270 = vdwg.mxu0
    %v272 = vsel %vm137, %v165, 0
    %v275 = vsel %vm137, %v204, 0
    %277 = vmatpush.xpose.msra.mxu0 0.0
    %278 = vmatpush.xpose.msra.mxu0 0.0
    %279 = vmatpush.xpose.msra.mxu0 0.0
    %280 = vmatpush.xpose.msra.mxu0 0.0
    %281 = vmatpush.xpose.msra.mxu0 0.0
    %282 = vmatpush.xpose.msra.mxu0 0.0
    %283 = vmatpush.xpose.msra.mxu0 0.0
    %284 = vmatpush.xpose.msra.mxu0 0.0
    %285 = vmatpush.xpose.msra.mxu0 0.0
    %286 = vmatpush.xpose.msra.mxu0 0.0
    %287 = vmatpush.xpose.msra.mxu0 0.0
    %288 = vmatpush.xpose.msra.mxu0 0.0
    %289 = vmatpush.xpose.msra.mxu0 0.0
    %290 = vmatpush.xpose.msra.mxu0 0.0
    %291 = vmatpush.xpose.msra.mxu0 0.0
    %292 = vmatpush.xpose.msra.mxu0 %v275
    %293 = vmatmul.f32.gmra.mxu0 %v272
    %v294 = vpop.f32.mrf.mxu0
    %v295 = vadd.f32 0.0, %v294
    %296 = vdwg.mxu0
    %v297 = vmul.f32 %v269, 0.17677669
    %v298 = vmul.f32 %v295, 0.17677669
    %vm299 = vcmask 64512
    %v300 = vsel %vm299, %v297, -inf
    %301 = vmax.xlane.f32.xlu0 %v300
    %v302 = vpop.xlane.xlu0 %301
    %v303 = vsel %vm299, %v298, -inf
    %304 = vmax.xlane.f32.xlu0 %v303
    %v305 = vpop.xlane.xlu0 %304
    %v306 = vsub.f32 %v297, %v302
    %v307 = vsub.f32 %v298, %v305
    %v308 = vmul.f32 %v306, 1.442695
    %v309 = vpow.pop %v308
    %v310 = vmul.f32 %v307, 1.442695
    %v311 = vpow.pop %v310
    %v312 = vsel %vm299, %v309, 0.0
    %313 = vadd.xlane.f32.xlu0 %v312
    %v314 = vpop.xlane.xlu0 %313
    %v315 = vsel %vm299, %v311, 0.0
    %316 = vadd.xlane.f32.xlu0 %v315
    %v317 = vpop.xlane.xlu0 %316
    %v318 = vrcp.pop %v314
    %v319 = vmul.f32 %v314, %v318
    %v320 = vsub.f32 1.0, %v319
    %v321 = vmul.f32 %v318, %v320
    %v322 = vadd.f32 %v318, %v321
    %vm323 = vweird.f32 %v314
    %vm324 = vweird.f32 %v318
    %vm325 = vmor %vm323, %vm324
    %v326 = vsel %vm325, %v318, %v322
    %v327 = vand.u32 2147483647, %v314
    %vm328 = vcmp.eq.f32.partialorder %v327, 8.507059e+37
    %v329 = vand.u32 %v314, 2147483648
    %v330 = vor.u32 1.1754944e-38, %v329
    %v331 = vsel %vm328, %v330, %v326
    %v332 = vrcp.pop %v317
    %v333 = vmul.f32 %v317, %v332
    %v334 = vsub.f32 1.0, %v333
    %v335 = vmul.f32 %v332, %v334
    %v336 = vadd.f32 %v332, %v335
    %vm337 = vweird.f32 %v317
    %vm338 = vweird.f32 %v332
    %vm339 = vmor %vm337, %vm338
    %v340 = vsel %vm339, %v332, %v336
    %v341 = vand.u32 2147483647, %v317
    %vm342 = vcmp.eq.f32.partialorder %v341, 8.507059e+37
    %v343 = vand.u32 %v317, 2147483648
    %v344 = vor.u32 1.1754944e-38, %v343
    %v345 = vsel %vm342, %v344, %v340
    %v346 = vmul.f32 %v309, %v331
    %v347 = vmul.f32 %v311, %v345
    %v349 = vsel %vm299, %v346, 0
    %351 = vmatpush.msra.mxu0 0.0
    %352 = vmatpush.msra.mxu0 0.0
    %353 = vmatpush.msra.mxu0 0.0
    %354 = vmatpush.msra.mxu0 0.0
    %355 = vmatpush.msra.mxu0 0.0
    %356 = vmatpush.msra.mxu0 0.0
    %357 = vmatpush.msra.mxu0 0.0
    %358 = vmatpush.msra.mxu0 0.0
    %359 = vmatpush.msra.mxu0 0.0
    %360 = vmatpush.msra.mxu0 0.0
    %361 = vmatpush.msra.mxu0 0.0
    %362 = vmatpush.msra.mxu0 0.0
    %363 = vmatpush.msra.mxu0 0.0
    %364 = vmatpush.msra.mxu0 0.0
    %365 = vmatpush.msra.mxu0 0.0
    %366 = vmatpush.msra.mxu0 %v240
    %367 = vmatmul.f32.gmra.mxu0 %v349
    %v368 = vpop.f32.mrf.mxu0
    %v369 = vadd.f32 0.0, %v368
    %370 = vdwg.mxu0
    %v372 = vsel %vm299, %v347, 0
    %374 = vmatpush.msra.mxu0 0.0
    %375 = vmatpush.msra.mxu0 0.0
    %376 = vmatpush.msra.mxu0 0.0
    %377 = vmatpush.msra.mxu0 0.0
    %378 = vmatpush.msra.mxu0 0.0
    %379 = vmatpush.msra.mxu0 0.0
    %380 = vmatpush.msra.mxu0 0.0
    %381 = vmatpush.msra.mxu0 0.0
    %382 = vmatpush.msra.mxu0 0.0
    %383 = vmatpush.msra.mxu0 0.0
    %384 = vmatpush.msra.mxu0 0.0
    %385 = vmatpush.msra.mxu0 0.0
    %386 = vmatpush.msra.mxu0 0.0
    %387 = vmatpush.msra.mxu0 0.0
    %388 = vmatpush.msra.mxu0 0.0
    %389 = vmatpush.msra.mxu0 %v243
    %390 = vmatmul.f32.gmra.mxu0 %v372
    %v391 = vpop.f32.mrf.mxu0
    %v392 = vadd.f32 0.0, %v391
    %393 = vdwg.mxu0
    %394 = vst.msk [vmem:[#allocation13] sm:$0xff] %vm137, %v369
    %395 = vst.msk [vmem:[#allocation13 + $0x8] sm:$0xff] %vm137, %v392
    // Predicated region
    $region62: #{attention_head.1} parent=1 // pred_check
      _
    $region63: #{attention_head.1} parent=1 // pred_check_branch
      %397 = sbr.rel (0) target = $region65
    $region64: #{attention_head.1} parent=1 // pred_region
      %399 = vsyncadd [#allocation4], 0
      %s400 = sshll.u32 [#allocation13], 4
      %s401 = int_to_ptr.vmem [resolvable:$true] %s400
      %s402 = sshll.u32 %s9, 4
      %s403 = int_to_ptr.hbm [resolvable:$true] %s402
      %408 = dma.vmem_to_hbm [thread:$0]  %s401, 256, %s403, [#allocation4], 128, 128, 8
    $region65: #{attention_head.1} parent=1 // pred_fallthru
      _
    // Predicated region
    $region66: #{attention_head.1} parent=1 // pred_check
      _
    $region67: #{attention_head.1} parent=1 // pred_check_branch
      %410 = sbr.rel (0) target = $region69
    $region68: #{attention_head.1} parent=1 // pred_region
      %412 = dma.done [#allocation4], 256
    $region69: #{attention_head.1} parent=1 // pred_fallthru
      _
    %413 = vsyncpa [#allocation3], 1
    %414 = vsyncpa [#allocation6], 1
    %415 = vsyncpa [#allocation9], 1
    %416 = vsyncpa [#allocation12], 1
    %417 = vsyncpa [#allocation4], 1

</llo_original>
